<compile_context>
chip_gen: v7x
topology: tpu7x:2x2x1
jax: 0.10.0
libtpu: 0.0.40
codegen_flags: <defaults>
</compile_context>

<pallas_src>
import jax
import jax.numpy as jnp
from jax.experimental import pallas as pl
from jax.experimental.pallas import tpu as pltpu

# ---- model hyperparameters (from the PyTorch module) -----------------------
EMBEDDING_DIM = 8
HIDDEN_DIM = 16
NGRAM = 3
OUTPUT_DIM = 20
VOCAB = ['the', 'cat', 'sat', 'on', 'mat', 'dog', 'ran', 'fast', 'slow',
         'bird', 'flew', 'high', 'low', 'fish', 'swam', 'deep', 'blue',
         'sky', 'green', 'grass', 'is']
VOCAB_SIZE = len(VOCAB)  # 21

# ---- packed-slab layout (rows of a single (SLAB_ROWS, 128) f32 buffer) -----
LANE = 128
PAD_V = 24                      # vocab rows padded to a multiple of 8; 3*24=72 <= 128
TAB_OFF = 0                     # 128 rows: stacked emb@W1_g tables (g*PAD_V + token)
B1_OFF = TAB_OFF + LANE         # 128
W2_OFF = B1_OFF + 8             # 136
B2_OFF = W2_OFF + LANE          # 264
W35_OFF = B2_OFF + 8            # 272
B35_OFF = W35_OFF + LANE        # 400
SLAB_ROWS = B35_OFF + 8         # 408 rows (~204 KiB f32)


# ---- Pallas kernel ----------------------------------------------------------
def seven_layer_kernel(idx_ref, w_ref, out_ref):
    # idx_ref: (TM, NGRAM) int32 tile in VMEM
    # w_ref:   (SLAB_ROWS, 128) f32 packed weights in VMEM (constant index_map)
    # out_ref: (TM, 128) f32 lane-dense output tile
    tm = out_ref.shape[0]
    idx = idx_ref[...]                                      # (TM, 3) int32

    # embedding + fc1 folded: build a (TM, 128) one-hot over the stacked
    # 3 x PAD_V table rows and run ONE MXU matmul against the table block.
    col = jax.lax.broadcasted_iota(jnp.int32, (tm, LANE), 1)
    t0 = idx[:, 0:1]                                        # token of position 0
    t1 = idx[:, 1:2] + PAD_V                                # position 1 -> rows 24..
    t2 = idx[:, 2:3] + 2 * PAD_V                            # position 2 -> rows 48..
    onehot = ((col == t0) | (col == t1) | (col == t2)).astype(jnp.float32)

    tab = w_ref[TAB_OFF:TAB_OFF + LANE, :]                  # (128, 128)
    b1 = w_ref[B1_OFF:B1_OFF + 1, :]                        # (1, 128)
    h = jnp.maximum(
        jnp.dot(onehot, tab, preferred_element_type=jnp.float32) + b1, 0.0)

    # fc2 + relu
    w2 = w_ref[W2_OFF:W2_OFF + LANE, :]
    b2 = w_ref[B2_OFF:B2_OFF + 1, :]
    h = jnp.maximum(
        jnp.dot(h, w2, preferred_element_type=jnp.float32) + b2, 0.0)

    # fc3 folded into fc5: w35 = w3 @ w5, b35 = b3 @ w5 + b5 (exact)
    w35 = w_ref[W35_OFF:W35_OFF + LANE, :]
    b35 = w_ref[B35_OFF:B35_OFF + 1, :]
    out_ref[...] = jnp.dot(h, w35, preferred_element_type=jnp.float32) + b35


def _choose_tm(batch):
    """Batch tile: fill the MXU rows but keep >=2 grid steps when possible."""
    b8 = ((batch + 7) // 8) * 8
    half = ((max(b8 // 2, 8) + 7) // 8) * 8
    return min(256, half)


def seven_layer_net(x_idx, slab):
    """x_idx: int (B, NGRAM) token indices; slab: packed weights. -> (B, OUTPUT_DIM) f32."""
    B = x_idx.shape[0]
    tm = _choose_tm(B)
    B_pad = ((B + tm - 1) // tm) * tm
    idx = x_idx.astype(jnp.int32)
    if B_pad != B:
        idx = jnp.pad(idx, ((0, B_pad - B), (0, 0)))        # pad rows use token 0 (sliced off)

    out = pl.pallas_call(
        seven_layer_kernel,
        out_shape=jax.ShapeDtypeStruct((B_pad, LANE), jnp.float32),
        grid_spec=pltpu.PrefetchScalarGridSpec(
            num_scalar_prefetch=0,
            grid=(B_pad // tm,),
            in_specs=[
                pl.BlockSpec((tm, NGRAM), lambda i: (i, 0)),          # index tile
                pl.BlockSpec((SLAB_ROWS, LANE), lambda i: (0, 0)),    # weight slab (resident)
            ],
            out_specs=pl.BlockSpec((tm, LANE), lambda i: (i, 0)),
        ),
        compiler_params=pltpu.CompilerParams(
            dimension_semantics=("parallel",)),              # shards batch across TCs on v7x
    )(idx, slab)
    return out[:B, :OUTPUT_DIM]


# ---- one-time parameter packing (hoisted out of the per-call path) ----------
def pack_params(params):
    """Fold embedding into fc1 and fc3 into fc5; pack everything into one lane-128 slab."""
    emb = params["emb"].astype(jnp.float32)                 # (V, E)
    w1, b1 = params["w1"], params["b1"]                     # (E*NGRAM, H), (1, H)
    w2, b2 = params["w2"], params["b2"]                     # (H, H), (1, H)
    w35 = params["w3"] @ params["w5"]                       # (H, OUT)   exact fold
    b35 = params["b3"] @ params["w5"] + params["b5"]        # (1, OUT)

    slab = jnp.zeros((SLAB_ROWS, LANE), jnp.float32)
    for g in range(NGRAM):
        Mg = emb @ w1[g * EMBEDDING_DIM:(g + 1) * EMBEDDING_DIM, :]   # (V, H)
        r0 = TAB_OFF + g * PAD_V
        slab = slab.at[r0:r0 + VOCAB_SIZE, :HIDDEN_DIM].set(Mg)
    slab = slab.at[B1_OFF, :HIDDEN_DIM].set(b1[0])
    slab = slab.at[W2_OFF:W2_OFF + HIDDEN_DIM, :HIDDEN_DIM].set(w2)
    slab = slab.at[B2_OFF, :HIDDEN_DIM].set(b2[0])
    slab = slab.at[W35_OFF:W35_OFF + HIDDEN_DIM, :OUTPUT_DIM].set(w35)
    slab = slab.at[B35_OFF, :OUTPUT_DIM].set(b35[0])
    return slab


# ---- deterministic parameter init (synthetic weights, PyTorch shapes) -------
def init_params(key):
    def linear(key, fan_in, fan_out):
        kw, kb = jax.random.split(key)
        bound = 1.0 / jnp.sqrt(fan_in)
        # stored transposed vs torch: (in, out); bias as (1, out).
        w = jax.random.uniform(kw, (fan_in, fan_out), jnp.float32, -bound, bound)
        b = jax.random.uniform(kb, (1, fan_out), jnp.float32, -bound, bound)
        return w, b

    k_emb, k1, k2, k3, k4, k5 = jax.random.split(key, 6)
    params = {}
    params["emb"] = jax.random.normal(k_emb, (VOCAB_SIZE, EMBEDDING_DIM), jnp.float32)
    params["w1"], params["b1"] = linear(k1, EMBEDDING_DIM * NGRAM, HIDDEN_DIM)
    params["w2"], params["b2"] = linear(k2, HIDDEN_DIM, HIDDEN_DIM)
    params["w3"], params["b3"] = linear(k3, HIDDEN_DIM, HIDDEN_DIM)
    # fc4 exists in __init__ but is unused in forward(); initialized for parity only.
    params["w4"], params["b4"] = linear(k4, HIDDEN_DIM, HIDDEN_DIM)
    params["w5"], params["b5"] = linear(k5, HIDDEN_DIM, OUTPUT_DIM)
    return params


def reference_forward(x_idx, params):
    """Pure-JAX reference identical to the PyTorch forward (no folding)."""
    e = params["emb"][x_idx]                                # (B, ngram, E)
    h = e.reshape(x_idx.shape[0], -1)                       # (B, ngram*E)
    h = jnp.maximum(h @ params["w1"] + params["b1"], 0.0)
    h = jnp.maximum(h @ params["w2"] + params["b2"], 0.0)
    h = h @ params["w3"] + params["b3"]
    return h @ params["w5"] + params["b5"]


if __name__ == "__main__":
    key = jax.random.PRNGKey(0)
    k_params, k_x1, k_x2 = jax.random.split(key, 3)

    params = init_params(k_params)
    slab = pack_params(params)          # one-time packing, outside the call path

    # small batch (single grid step)
    B = 8
    x_idx = jax.random.randint(k_x1, (B, NGRAM), 0, VOCAB_SIZE, dtype=jnp.int32)
    out = jax.block_until_ready(seven_layer_net(x_idx, slab))
    ref = reference_forward(x_idx, params)
    assert out.shape == (B, OUTPUT_DIM)
    assert jnp.allclose(out, ref, atol=1e-4, rtol=1e-4), "mismatch vs reference (B=8)"

    # ragged batch: exercises padding + a 2-step parallel grid (both TCs on v7x)
    B2 = 37
    x_idx2 = jax.random.randint(k_x2, (B2, NGRAM), 0, VOCAB_SIZE, dtype=jnp.int32)
    out2 = jax.block_until_ready(seven_layer_net(x_idx2, slab))
    ref2 = reference_forward(x_idx2, params)
    assert out2.shape == (B2, OUTPUT_DIM)
    assert jnp.allclose(out2, ref2, atol=1e-4, rtol=1e-4), "mismatch vs reference (B=37)"

    print("KERNEL_OK")
</pallas_src>

<mosaic_0001>
module attributes {stable_mosaic.version = 11 : i64} {
  func.func @seven_layer_kernel(%arg0: i32, %arg1: memref<8x3xi32, #tpu.memory_space<vmem>>, %arg2: memref<408x128xf32, #tpu.memory_space<vmem>>, %arg3: memref<8x128xf32, #tpu.memory_space<vmem>>) attributes {dimension_semantics = [#tpu.dimension_semantics<parallel>], iteration_bounds = array<i64: 1>, scalar_prefetch = 0 : i64, scratch_operands = 0 : i64, tpu.core_type = #tpu.core_type<tc>, window_params = [{transform_indices = @transform_0, window_bounds = array<i64: 8, 3>}, {pipeline_mode = #tpu.pipeline_mode<synchronous>, transform_indices = @transform_1, window_bounds = array<i64: 408, 128>}, {transform_indices = @transform_2, window_bounds = array<i64: 8, 128>}]} {
    %c0 = arith.constant 0 : index
    %c0_0 = arith.constant 0 : index
    %0 = vector.load %arg1[%c0, %c0_0] : memref<8x3xi32, #tpu.memory_space<vmem>>, vector<8x3xi32>
    %1 = tpu.iota {dimensions = array<i32: 1>} : vector<8x128xi32>
    %2 = vector.extract_strided_slice %0 {offsets = [0, 0], sizes = [8, 1], strides = [1, 1]} : vector<8x3xi32> to vector<8x1xi32>
    %3 = vector.extract_strided_slice %0 {offsets = [0, 1], sizes = [8, 1], strides = [1, 1]} : vector<8x3xi32> to vector<8x1xi32>
    %c24_i32 = arith.constant 24 : i32
    %4 = vector.broadcast %c24_i32 : i32 to vector<8x1xi32>
    %5 = arith.addi %3, %4 : vector<8x1xi32>
    %6 = vector.extract_strided_slice %0 {offsets = [0, 2], sizes = [8, 1], strides = [1, 1]} : vector<8x3xi32> to vector<8x1xi32>
    %c48_i32 = arith.constant 48 : i32
    %7 = vector.broadcast %c48_i32 : i32 to vector<8x1xi32>
    %8 = arith.addi %6, %7 : vector<8x1xi32>
    %9 = vector.broadcast %2 : vector<8x1xi32> to vector<8x128xi32>
    %10 = arith.cmpi eq, %1, %9 : vector<8x128xi32>
    %11 = vector.broadcast %5 : vector<8x1xi32> to vector<8x128xi32>
    %12 = arith.cmpi eq, %1, %11 : vector<8x128xi32>
    %13 = arith.ori %10, %12 : vector<8x128xi1>
    %14 = vector.broadcast %8 : vector<8x1xi32> to vector<8x128xi32>
    %15 = arith.cmpi eq, %1, %14 : vector<8x128xi32>
    %16 = arith.ori %13, %15 : vector<8x128xi1>
    %17 = arith.extui %16 : vector<8x128xi1> to vector<8x128xi32>
    %18 = arith.sitofp %17 : vector<8x128xi32> to vector<8x128xf32>
    %c0_1 = arith.constant 0 : index
    %c0_2 = arith.constant 0 : index
    %19 = vector.load %arg2[%c0_1, %c0_2] : memref<408x128xf32, #tpu.memory_space<vmem>>, vector<128x128xf32>
    %c128 = arith.constant 128 : index
    %c0_3 = arith.constant 0 : index
    %20 = vector.load %arg2[%c128, %c0_3] : memref<408x128xf32, #tpu.memory_space<vmem>>, vector<1x128xf32>
    %cst = arith.constant dense<0.000000e+00> : vector<8x128xf32>
    %21 = tpu.matmul %18, %19, %cst {dimension_numbers = #tpu.dot_dimension_numbers<[1], [0], [0], [1], [0, 0, 1, 1], [], []>} : vector<8x128xf32>, vector<128x128xf32>, vector<8x128xf32> -> vector<8x128xf32>
    %22 = vector.broadcast %20 : vector<1x128xf32> to vector<8x128xf32>
    %23 = arith.addf %21, %22 : vector<8x128xf32>
    %cst_4 = arith.constant 0.000000e+00 : f32
    %24 = vector.broadcast %cst_4 : f32 to vector<8x128xf32>
    %25 = arith.maximumf %23, %24 : vector<8x128xf32>
    %c136 = arith.constant 136 : index
    %c0_5 = arith.constant 0 : index
    %26 = vector.load %arg2[%c136, %c0_5] : memref<408x128xf32, #tpu.memory_space<vmem>>, vector<128x128xf32>
    %c264 = arith.constant 264 : index
    %c0_6 = arith.constant 0 : index
    %27 = vector.load %arg2[%c264, %c0_6] : memref<408x128xf32, #tpu.memory_space<vmem>>, vector<1x128xf32>
    %cst_7 = arith.constant dense<0.000000e+00> : vector<8x128xf32>
    %28 = tpu.matmul %25, %26, %cst_7 {dimension_numbers = #tpu.dot_dimension_numbers<[1], [0], [0], [1], [0, 0, 1, 1], [], []>} : vector<8x128xf32>, vector<128x128xf32>, vector<8x128xf32> -> vector<8x128xf32>
    %29 = vector.broadcast %27 : vector<1x128xf32> to vector<8x128xf32>
    %30 = arith.addf %28, %29 : vector<8x128xf32>
    %cst_8 = arith.constant 0.000000e+00 : f32
    %31 = vector.broadcast %cst_8 : f32 to vector<8x128xf32>
    %32 = arith.maximumf %30, %31 : vector<8x128xf32>
    %c272 = arith.constant 272 : index
    %c0_9 = arith.constant 0 : index
    %33 = vector.load %arg2[%c272, %c0_9] : memref<408x128xf32, #tpu.memory_space<vmem>>, vector<128x128xf32>
    %c400 = arith.constant 400 : index
    %c0_10 = arith.constant 0 : index
    %34 = vector.load %arg2[%c400, %c0_10] : memref<408x128xf32, #tpu.memory_space<vmem>>, vector<1x128xf32>
    %cst_11 = arith.constant dense<0.000000e+00> : vector<8x128xf32>
    %35 = tpu.matmul %32, %33, %cst_11 {dimension_numbers = #tpu.dot_dimension_numbers<[1], [0], [0], [1], [0, 0, 1, 1], [], []>} : vector<8x128xf32>, vector<128x128xf32>, vector<8x128xf32> -> vector<8x128xf32>
    %36 = vector.broadcast %34 : vector<1x128xf32> to vector<8x128xf32>
    %37 = arith.addf %35, %36 : vector<8x128xf32>
    %c0_12 = arith.constant 0 : index
    %c0_13 = arith.constant 0 : index
    %38 = vector.load %arg3[%c0_12, %c0_13] : memref<8x128xf32, #tpu.memory_space<vmem>>, vector<8x128xf32>
    tpu.vector_store %arg3[%c0_12, %c0_13], %37 {strides = array<i32>} : memref<8x128xf32, #tpu.memory_space<vmem>>, vector<8x128xf32>,
    return
  }
  func.func @transform_0(%arg0: i32) -> (i32, i32) {
    %c0_i32 = arith.constant 0 : i32
    %c0_i32_0 = arith.constant 0 : i32
    return %arg0, %c0_i32 : i32, i32
  }
  func.func @transform_1(%arg0: i32) -> (i32, i32) {
    %c0_i32 = arith.constant 0 : i32
    %c0_i32_0 = arith.constant 0 : i32
    %c0_i32_1 = arith.constant 0 : i32
    return %c0_i32, %c0_i32_0 : i32, i32
  }
  func.func @transform_2(%arg0: i32) -> (i32, i32) {
    %c0_i32 = arith.constant 0 : i32
    %c0_i32_0 = arith.constant 0 : i32
    return %arg0, %c0_i32 : i32, i32
  }
}

</mosaic_0001>

<llo_original>
// kernel: tpu_custom_call.1
$region0: #{tpu_custom_call.1}
  #allocation0 [shape = 'u32[]', space=smem, size = 0x4, offset = 0x4, fixed_abs, tag = 'smem constant byte address 0x4 - core index']
  #allocation1 [shape = 'u32[144,128]{1,0:T(1,128)}', space=vmem, size = 0x12000, scoped, tag = 'internal scratch']
  %s0 = inlined_call_operand.vmem [shape: s32[8,3], index: 0, kind: input, shape index: {}]
  %s1 = inlined_call_operand.hbm [shape: f32[408,128], index: 1, kind: input, shape index: {}]
  %s2 = inlined_call_operand.hbm [shape: f32[8,128], index: 2, kind: output, shape index: {}]
  %s3 = sld [smem:[#allocation0]]
  $region22: #{tpu_custom_call.1} parent=0
    _
  %s5 = ssub.s32 1, %s3
  %s6 = scalar_select 0, %s5, %s3
  $region1: #{tpu_custom_call.1} parent=0
    #allocation2 [shape = 'u8[208896]{0}', space=vmem, size = 0x33000, scoped, tag = 'input window, operand 1, single buffered']
    #allocation3 [shape = 's32[1]{0}', space=sflag, size = 0x4, scoped, tag = 'scoped memory for tpu_custom_call.1']
    #allocation4 [shape = 's32[1]{0}', space=sflag, size = 0x4, scoped, tag = 'scoped memory for tpu_custom_call.1']
    #allocation5 [shape = 'u8[4096]{0}', space=vmem, size = 0x1000, scoped, tag = 'output window, operand 0, single buffered']
    %7 = vsyncpa [#allocation3], 0
    %8 = vsyncpa [#allocation4], 0
    // Predicated region
    $region2: #{tpu_custom_call.1} parent=1 // pred_check
      _
    $region3: #{tpu_custom_call.1} parent=1 // pred_check_branch
      %10 = sbr.rel (0) target = $region5
    $region4: #{tpu_custom_call.1} parent=1 // pred_region
      _
    $region5: #{tpu_custom_call.1} parent=1 // pred_fallthru
      _
    // Predicated region
    $region6: #{tpu_custom_call.1} parent=1 // pred_check
      _
    $region7: #{tpu_custom_call.1} parent=1 // pred_check_branch
      %12 = sbr.rel (0) target = $region9
    $region8: #{tpu_custom_call.1} parent=1 // pred_region
      %s14 = ssub.s32 6528, 6528
      %15 = vsyncadd [#allocation3], %s14
      %s16 = sshll.u32 [#allocation2], 4
      %s17 = int_to_ptr.vmem [resolvable:$true] %s16
      %22 = dma.hbm_to_vmem [thread:$0]  %s1, 6528, %s17, [#allocation3], 128, 128, 8
    $region9: #{tpu_custom_call.1} parent=1 // pred_fallthru
      _
    // Predicated region
    $region10: #{tpu_custom_call.1} parent=1 // pred_check
      _
    $region11: #{tpu_custom_call.1} parent=1 // pred_check_branch
      %24 = sbr.rel (0) target = $region13
    $region12: #{tpu_custom_call.1} parent=1 // pred_region
      %25 = dma.done [#allocation3], 6528
    $region13: #{tpu_custom_call.1} parent=1 // pred_fallthru
      _
    %v26 = vld [vmem:[%s0] sm:$0xff]
    %v27 = vlaneseq
    %v28 = vand.u32 %v27, 127
    %v29 = vadd.s32 %v26, 24
    %v30 = vadd.s32 %v26, 48
    %31 = vset.pattern.permute.xlu0 0
    %32 = vperm.xlu0 %31, %v26
    %v33 = vpop.permute.xlu0 %32
    %vm34 = vcmp.eq.s32.totalorder %v28, %v33
    %35 = vset.pattern.permute.xlu0 1
    %36 = vperm.xlu0 %35, %v29
    %v37 = vpop.permute.xlu0 %36
    %vm38 = vcmp.eq.s32.totalorder %v28, %v37
    %vm39 = vmor %vm34, %vm38
    %40 = vset.pattern.permute.xlu0 2
    %41 = vperm.xlu0 %40, %v30
    %v42 = vpop.permute.xlu0 %41
    %vm43 = vcmp.eq.s32.totalorder %v28, %v42
    %vm44 = vmor %vm39, %vm43
    %v45 = vsel %vm44, 1, 0
    %v46 = vcvt.s32.f32 %v45
    %v47 = vld [vmem:[#allocation2] sm:$0xff]
    %v48 = vld [vmem:[#allocation2 + $0x8] sm:$0xff]
    %v49 = vld [vmem:[#allocation2 + $0x10] sm:$0xff]
    %v50 = vld [vmem:[#allocation2 + $0x18] sm:$0xff]
    %v51 = vld [vmem:[#allocation2 + $0x20] sm:$0xff]
    %v52 = vld [vmem:[#allocation2 + $0x28] sm:$0xff]
    %v53 = vld [vmem:[#allocation2 + $0x30] sm:$0xff]
    %v54 = vld [vmem:[#allocation2 + $0x38] sm:$0xff]
    %v55 = vld [vmem:[#allocation2 + $0x40] sm:$0xff]
    %v56 = vld [vmem:[#allocation2 + $0x48] sm:$0xff]
    %v57 = vld [vmem:[#allocation2 + $0x50] sm:$0xff]
    %v58 = vld [vmem:[#allocation2 + $0x58] sm:$0xff]
    %v59 = vld [vmem:[#allocation2 + $0x60] sm:$0xff]
    %v60 = vld [vmem:[#allocation2 + $0x68] sm:$0xff]
    %v61 = vld [vmem:[#allocation2 + $0x70] sm:$0xff]
    %v62 = vld [vmem:[#allocation2 + $0x78] sm:$0xff]
    %v63 = vld [vmem:[#allocation2 + $0x80] sm:$0x1]
    %v64 = vlaneseq
    %v65 = vshrl.u32 %v64, 7
    %v66 = vsub.s32 0, %v65
    %v67 = vrot.slane %v63, %v66
    %68 = vmatprep.subr.mxu0 0.0
    %69 = vmatpush1.msra.mxu0 %v47
    %70 = vmatprep.subr.mxu0 0.0
    %71 = vmatpush1.msra.mxu0 %v48
    %72 = vmatprep.subr.mxu0 0.0
    %73 = vmatpush1.msra.mxu0 %v49
    %74 = vmatprep.subr.mxu0 0.0
    %75 = vmatpush1.msra.mxu0 %v50
    %76 = vmatprep.subr.mxu0 0.0
    %77 = vmatpush1.msra.mxu0 %v51
    %78 = vmatprep.subr.mxu0 0.0
    %79 = vmatpush1.msra.mxu0 %v52
    %80 = vmatprep.subr.mxu0 0.0
    %81 = vmatpush1.msra.mxu0 %v53
    %82 = vmatprep.subr.mxu0 0.0
    %83 = vmatpush1.msra.mxu0 %v54
    %84 = vmatprep.subr.mxu0 0.0
    %85 = vmatpush1.msra.mxu0 %v55
    %86 = vmatprep.subr.mxu0 0.0
    %87 = vmatpush1.msra.mxu0 %v56
    %88 = vmatprep.subr.mxu0 0.0
    %89 = vmatpush1.msra.mxu0 %v57
    %90 = vmatprep.subr.mxu0 0.0
    %91 = vmatpush1.msra.mxu0 %v58
    %92 = vmatprep.subr.mxu0 0.0
    %93 = vmatpush1.msra.mxu0 %v59
    %94 = vmatprep.subr.mxu0 0.0
    %95 = vmatpush1.msra.mxu0 %v60
    %96 = vmatprep.subr.mxu0 0.0
    %97 = vmatpush1.msra.mxu0 %v61
    %98 = vmatprep.subr.mxu0 0.0
    %99 = vmatpush1.msra.mxu0 %v62
    %100 = vmatprep.subr.mxu0 0.0
    %101 = vmatpush1.msra.mxu0 0.0
    %102 = vmatprep.subr.mxu0 0.0
    %103 = vmatpush1.msra.mxu0 0.0
    %104 = vmatprep.subr.mxu0 0.0
    %105 = vmatpush1.msra.mxu0 0.0
    %106 = vmatprep.subr.mxu0 0.0
    %107 = vmatpush1.msra.mxu0 0.0
    %108 = vmatprep.subr.mxu0 0.0
    %109 = vmatpush1.msra.mxu0 0.0
    %110 = vmatprep.subr.mxu0 0.0
    %111 = vmatpush1.msra.mxu0 0.0
    %112 = vmatprep.subr.mxu0 0.0
    %113 = vmatpush1.msra.mxu0 0.0
    %114 = vmatprep.subr.mxu0 0.0
    %115 = vmatpush1.msra.mxu0 0.0
    %116 = vmatprep.subr.mxu0 0.0
    %117 = vmatpush1.msra.mxu0 0.0
    %118 = vmatprep.subr.mxu0 0.0
    %119 = vmatpush1.msra.mxu0 0.0
    %120 = vmatprep.subr.mxu0 0.0
    %121 = vmatpush1.msra.mxu0 0.0
    %122 = vmatprep.subr.mxu0 0.0
    %123 = vmatpush1.msra.mxu0 0.0
    %124 = vmatprep.subr.mxu0 0.0
    %125 = vmatpush1.msra.mxu0 0.0
    %126 = vmatprep.subr.mxu0 0.0
    %127 = vmatpush1.msra.mxu0 0.0
    %128 = vmatprep.subr.mxu0 0.0
    %129 = vmatpush1.msra.mxu0 0.0
    %130 = vmatprep.subr.mxu0 0.0
    %131 = vmatpush1.msra.mxu0 0.0
    %132 = vmatprep.mubr.f32.mxu0 0.0
    %133 = vmatmul.mubr.f32.gmra.mrb[0].mxu0 %v46
    %v134 = vpop.f32.mrb[0].mxu0
    %v135 = vadd.f32 %v67, %v134
    %v136 = vpop.f32.mrb[0].mxu0
    %137 = vdwg.mxu0
    %v138 = vmax.f32 %v135, 0.0
    %v139 = vld [vmem:[#allocation2 + $0x88] sm:$0xff]
    %v140 = vld [vmem:[#allocation2 + $0x90] sm:$0xff]
    %v141 = vld [vmem:[#allocation2 + $0x98] sm:$0xff]
    %v142 = vld [vmem:[#allocation2 + $0xa0] sm:$0xff]
    %v143 = vld [vmem:[#allocation2 + $0xa8] sm:$0xff]
    %v144 = vld [vmem:[#allocation2 + $0xb0] sm:$0xff]
    %v145 = vld [vmem:[#allocation2 + $0xb8] sm:$0xff]
    %v146 = vld [vmem:[#allocation2 + $0xc0] sm:$0xff]
    %v147 = vld [vmem:[#allocation2 + $0xc8] sm:$0xff]
    %v148 = vld [vmem:[#allocation2 + $0xd0] sm:$0xff]
    %v149 = vld [vmem:[#allocation2 + $0xd8] sm:$0xff]
    %v150 = vld [vmem:[#allocation2 + $0xe0] sm:$0xff]
    %v151 = vld [vmem:[#allocation2 + $0xe8] sm:$0xff]
    %v152 = vld [vmem:[#allocation2 + $0xf0] sm:$0xff]
    %v153 = vld [vmem:[#allocation2 + $0xf8] sm:$0xff]
    %v154 = vld [vmem:[#allocation2 + $0x100] sm:$0xff]
    %v155 = vld [vmem:[#allocation2 + $0x108] sm:$0x1]
    %v156 = vlaneseq
    %v157 = vshrl.u32 %v156, 7
    %v158 = vsub.s32 0, %v157
    %v159 = vrot.slane %v155, %v158
    %160 = vmatprep.subr.mxu0 0.0
    %161 = vmatpush1.msra.mxu0 %v139
    %162 = vmatprep.subr.mxu0 0.0
    %163 = vmatpush1.msra.mxu0 %v140
    %164 = vmatprep.subr.mxu0 0.0
    %165 = vmatpush1.msra.mxu0 %v141
    %166 = vmatprep.subr.mxu0 0.0
    %167 = vmatpush1.msra.mxu0 %v142
    %168 = vmatprep.subr.mxu0 0.0
    %169 = vmatpush1.msra.mxu0 %v143
    %170 = vmatprep.subr.mxu0 0.0
    %171 = vmatpush1.msra.mxu0 %v144
    %172 = vmatprep.subr.mxu0 0.0
    %173 = vmatpush1.msra.mxu0 %v145
    %174 = vmatprep.subr.mxu0 0.0
    %175 = vmatpush1.msra.mxu0 %v146
    %176 = vmatprep.subr.mxu0 0.0
    %177 = vmatpush1.msra.mxu0 %v147
    %178 = vmatprep.subr.mxu0 0.0
    %179 = vmatpush1.msra.mxu0 %v148
    %180 = vmatprep.subr.mxu0 0.0
    %181 = vmatpush1.msra.mxu0 %v149
    %182 = vmatprep.subr.mxu0 0.0
    %183 = vmatpush1.msra.mxu0 %v150
    %184 = vmatprep.subr.mxu0 0.0
    %185 = vmatpush1.msra.mxu0 %v151
    %186 = vmatprep.subr.mxu0 0.0
    %187 = vmatpush1.msra.mxu0 %v152
    %188 = vmatprep.subr.mxu0 0.0
    %189 = vmatpush1.msra.mxu0 %v153
    %190 = vmatprep.subr.mxu0 0.0
    %191 = vmatpush1.msra.mxu0 %v154
    %192 = vmatprep.subr.mxu0 0.0
    %193 = vmatpush1.msra.mxu0 0.0
    %194 = vmatprep.subr.mxu0 0.0
    %195 = vmatpush1.msra.mxu0 0.0
    %196 = vmatprep.subr.mxu0 0.0
    %197 = vmatpush1.msra.mxu0 0.0
    %198 = vmatprep.subr.mxu0 0.0
    %199 = vmatpush1.msra.mxu0 0.0
    %200 = vmatprep.subr.mxu0 0.0
    %201 = vmatpush1.msra.mxu0 0.0
    %202 = vmatprep.subr.mxu0 0.0
    %203 = vmatpush1.msra.mxu0 0.0
    %204 = vmatprep.subr.mxu0 0.0
    %205 = vmatpush1.msra.mxu0 0.0
    %206 = vmatprep.subr.mxu0 0.0
    %207 = vmatpush1.msra.mxu0 0.0
    %208 = vmatprep.subr.mxu0 0.0
    %209 = vmatpush1.msra.mxu0 0.0
    %210 = vmatprep.subr.mxu0 0.0
    %211 = vmatpush1.msra.mxu0 0.0
    %212 = vmatprep.subr.mxu0 0.0
    %213 = vmatpush1.msra.mxu0 0.0
    %214 = vmatprep.subr.mxu0 0.0
    %215 = vmatpush1.msra.mxu0 0.0
    %216 = vmatprep.subr.mxu0 0.0
    %217 = vmatpush1.msra.mxu0 0.0
    %218 = vmatprep.subr.mxu0 0.0
    %219 = vmatpush1.msra.mxu0 0.0
    %220 = vmatprep.subr.mxu0 0.0
    %221 = vmatpush1.msra.mxu0 0.0
    %222 = vmatprep.subr.mxu0 0.0
    %223 = vmatpush1.msra.mxu0 0.0
    %224 = vmatprep.mubr.f32.mxu0 0.0
    %225 = vmatmul.mubr.f32.gmra.mrb[0].mxu0 %v138
    %v226 = vpop.f32.mrb[0].mxu0
    %v227 = vadd.f32 %v159, %v226
    %v228 = vpop.f32.mrb[0].mxu0
    %229 = vdwg.mxu0
    %v230 = vmax.f32 %v227, 0.0
    %v231 = vld [vmem:[#allocation2 + $0x110] sm:$0xff]
    %v232 = vld [vmem:[#allocation2 + $0x118] sm:$0xff]
    %v233 = vld [vmem:[#allocation2 + $0x120] sm:$0xff]
    %v234 = vld [vmem:[#allocation2 + $0x128] sm:$0xff]
    %v235 = vld [vmem:[#allocation2 + $0x130] sm:$0xff]
    %v236 = vld [vmem:[#allocation2 + $0x138] sm:$0xff]
    %v237 = vld [vmem:[#allocation2 + $0x140] sm:$0xff]
    %v238 = vld [vmem:[#allocation2 + $0x148] sm:$0xff]
    %v239 = vld [vmem:[#allocation2 + $0x150] sm:$0xff]
    %v240 = vld [vmem:[#allocation2 + $0x158] sm:$0xff]
    %v241 = vld [vmem:[#allocation2 + $0x160] sm:$0xff]
    %v242 = vld [vmem:[#allocation2 + $0x168] sm:$0xff]
    %v243 = vld [vmem:[#allocation2 + $0x170] sm:$0xff]
    %v244 = vld [vmem:[#allocation2 + $0x178] sm:$0xff]
    %v245 = vld [vmem:[#allocation2 + $0x180] sm:$0xff]
    %v246 = vld [vmem:[#allocation2 + $0x188] sm:$0xff]
    %v247 = vld [vmem:[#allocation2 + $0x190] sm:$0x1]
    %v248 = vlaneseq
    %v249 = vshrl.u32 %v248, 7
    %v250 = vsub.s32 0, %v249
    %v251 = vrot.slane %v247, %v250
    %252 = vmatprep.subr.mxu0 0.0
    %253 = vmatpush1.msra.mxu0 %v231
    %254 = vmatprep.subr.mxu0 0.0
    %255 = vmatpush1.msra.mxu0 %v232
    %256 = vmatprep.subr.mxu0 0.0
    %257 = vmatpush1.msra.mxu0 %v233
    %258 = vmatprep.subr.mxu0 0.0
    %259 = vmatpush1.msra.mxu0 %v234
    %260 = vmatprep.subr.mxu0 0.0
    %261 = vmatpush1.msra.mxu0 %v235
    %262 = vmatprep.subr.mxu0 0.0
    %263 = vmatpush1.msra.mxu0 %v236
    %264 = vmatprep.subr.mxu0 0.0
    %265 = vmatpush1.msra.mxu0 %v237
    %266 = vmatprep.subr.mxu0 0.0
    %267 = vmatpush1.msra.mxu0 %v238
    %268 = vmatprep.subr.mxu0 0.0
    %269 = vmatpush1.msra.mxu0 %v239
    %270 = vmatprep.subr.mxu0 0.0
    %271 = vmatpush1.msra.mxu0 %v240
    %272 = vmatprep.subr.mxu0 0.0
    %273 = vmatpush1.msra.mxu0 %v241
    %274 = vmatprep.subr.mxu0 0.0
    %275 = vmatpush1.msra.mxu0 %v242
    %276 = vmatprep.subr.mxu0 0.0
    %277 = vmatpush1.msra.mxu0 %v243
    %278 = vmatprep.subr.mxu0 0.0
    %279 = vmatpush1.msra.mxu0 %v244
    %280 = vmatprep.subr.mxu0 0.0
    %281 = vmatpush1.msra.mxu0 %v245
    %282 = vmatprep.subr.mxu0 0.0
    %283 = vmatpush1.msra.mxu0 %v246
    %284 = vmatprep.subr.mxu0 0.0
    %285 = vmatpush1.msra.mxu0 0.0
    %286 = vmatprep.subr.mxu0 0.0
    %287 = vmatpush1.msra.mxu0 0.0
    %288 = vmatprep.subr.mxu0 0.0
    %289 = vmatpush1.msra.mxu0 0.0
    %290 = vmatprep.subr.mxu0 0.0
    %291 = vmatpush1.msra.mxu0 0.0
    %292 = vmatprep.subr.mxu0 0.0
    %293 = vmatpush1.msra.mxu0 0.0
    %294 = vmatprep.subr.mxu0 0.0
    %295 = vmatpush1.msra.mxu0 0.0
    %296 = vmatprep.subr.mxu0 0.0
    %297 = vmatpush1.msra.mxu0 0.0
    %298 = vmatprep.subr.mxu0 0.0
    %299 = vmatpush1.msra.mxu0 0.0
    %300 = vmatprep.subr.mxu0 0.0
    %301 = vmatpush1.msra.mxu0 0.0
    %302 = vmatprep.subr.mxu0 0.0
    %303 = vmatpush1.msra.mxu0 0.0
    %304 = vmatprep.subr.mxu0 0.0
    %305 = vmatpush1.msra.mxu0 0.0
    %306 = vmatprep.subr.mxu0 0.0
    %307 = vmatpush1.msra.mxu0 0.0
    %308 = vmatprep.subr.mxu0 0.0
    %309 = vmatpush1.msra.mxu0 0.0
    %310 = vmatprep.subr.mxu0 0.0
    %311 = vmatpush1.msra.mxu0 0.0
    %312 = vmatprep.subr.mxu0 0.0
    %313 = vmatpush1.msra.mxu0 0.0
    %314 = vmatprep.subr.mxu0 0.0
    %315 = vmatpush1.msra.mxu0 0.0
    %316 = vmatprep.mubr.f32.mxu0 0.0
    %317 = vmatmul.mubr.f32.gmra.mrb[0].mxu0 %v230
    %v318 = vpop.f32.mrb[0].mxu0
    %v319 = vadd.f32 %v251, %v318
    %v320 = vpop.f32.mrb[0].mxu0
    %321 = vdwg.mxu0
    %322 = vst [vmem:[#allocation5] sm:$0xff] %v319
    // Predicated region
    $region14: #{tpu_custom_call.1} parent=1 // pred_check
      _
    $region15: #{tpu_custom_call.1} parent=1 // pred_check_branch
      %324 = sbr.rel (0) target = $region17
    $region16: #{tpu_custom_call.1} parent=1 // pred_region
      %s326 = ssub.s32 128, 128
      %327 = vsyncadd [#allocation4], %s326
      %s329 = sshll.u32 [#allocation5], 4
      %s330 = int_to_ptr.vmem [resolvable:$true] %s329
      %332 = dma.vmem_to_hbm [thread:$0]  %s330, 128, %s2, [#allocation4]
    $region17: #{tpu_custom_call.1} parent=1 // pred_fallthru
      _
    // Predicated region
    $region18: #{tpu_custom_call.1} parent=1 // pred_check
      _
    $region19: #{tpu_custom_call.1} parent=1 // pred_check_branch
      %334 = sbr.rel (0) target = $region21
    $region20: #{tpu_custom_call.1} parent=1 // pred_region
      %335 = dma.done [#allocation4], 128
    $region21: #{tpu_custom_call.1} parent=1 // pred_fallthru
      _
    %336 = vsyncpa [#allocation3], 1
    %337 = vsyncpa [#allocation4], 1

</llo_original>
